<compile_context>
chip_gen: v6e
topology: v6e:2x2x1
jax: 0.10.0
libtpu: 0.0.40
codegen_flags: <defaults>
</compile_context>

<pallas_src>
import functools

import numpy as np
import jax
import jax.numpy as jnp
from jax.experimental import pallas as pl
from jax.experimental.pallas import tpu as pltpu


def _gaussian_kernel_1d(ksize: int, sigma: float) -> np.ndarray:
    """Replicates cv2.getGaussianKernel(ksize, sigma) for ksize > 7."""
    if sigma <= 0:
        sigma = 0.3 * ((ksize - 1) * 0.5 - 1) + 0.8
    x = np.arange(ksize, dtype=np.float64) - (ksize - 1) * 0.5
    g = np.exp(-(x * x) / (2.0 * sigma * sigma))
    return g / g.sum()


def _conv_matrix(n: int, g: np.ndarray) -> np.ndarray:
    """A (n x n) with A[i, i'] = g[pad + i' - i]; (A @ x) is the zero-padded
    'same' 1D correlation of each column of x with the taps g."""
    k = g.shape[0]
    pad = k // 2
    a = np.zeros((n, n), dtype=np.float64)
    for i in range(n):
        for ip in range(max(0, i - pad), min(n, i + pad + 1)):
            a[i, ip] = g[pad + ip - i]
    return a


def _usm_kernel(ah_ref, bw_ref, x_ref, o_ref, *, weight, threshold):
    # x_ref block: (1, h, pw) f32; ah_ref: (h, h) bf16; bw_ref: (pw, pw) bf16
    # (block-diagonal of A_w^T, one block per packed plane).
    x = x_ref[0]
    ah = ah_ref[...]
    bw = bw_ref[...]

    x_bf = x.astype(jnp.bfloat16)
    # Gaussian blur: separable conv as two MXU matmuls (bf16 in, f32 acc).
    blur = jnp.dot(
        jnp.dot(ah, x_bf, preferred_element_type=jnp.float32).astype(jnp.bfloat16),
        bw, preferred_element_type=jnp.float32)
    residual = x - blur
    # Compute `sharp` now so blur/residual can die before the mask matmuls
    # (fewer simultaneously-live full-tile temporaries -> less vreg/VMEM
    # pressure at large tiles).
    sharp = jnp.clip(x + weight * residual, 0.0, 1.0)
    mask = jnp.where(jnp.abs(residual) * 255.0 > threshold, 1.0, 0.0).astype(jnp.bfloat16)
    soft_mask = jnp.dot(
        jnp.dot(ah, mask, preferred_element_type=jnp.float32).astype(jnp.bfloat16),
        bw, preferred_element_type=jnp.float32)
    # Blend: soft_mask*sharp + (1 - soft_mask)*x == x + soft_mask*(sharp - x).
    o_ref[0] = x + soft_mask * (sharp - x)


def usm_sharp(img, radius: int = 50, sigma: float = 0.0,
              weight: float = 0.5, threshold: float = 10.0):
    """USMSharp.forward. img: (b, c, h, w) float32 in [0, 1]."""
    if radius % 2 == 0:          # same normalization as USMSharp.__init__
        radius += 1
    b, c, h, w = img.shape
    n = b * c

    # Lane-dense packing factor: group P planes along the last axis so the
    # lane dimension is >= 128 (an exact 128-multiple when w divides 128).
    if w >= 128:
        p = 1
    elif 128 % w == 0:
        p = 128 // w
    else:
        p = -(-128 // w)
    n_pad = -(-n // p) * p
    gsteps = n_pad // p
    pw = p * w

    g = _gaussian_kernel_1d(radius, sigma)
    ah = _conv_matrix(h, g)              # (h, h): height ("column") conv
    awt = _conv_matrix(w, g).T           # (w, w): width ("row") conv, transposed
    bw = np.kron(np.eye(p), awt)         # (pw, pw): per-packed-plane width conv

    ah_bf = jnp.asarray(ah, dtype=jnp.bfloat16)
    bw_bf = jnp.asarray(bw, dtype=jnp.bfloat16)

    x = img.reshape(n, h, w).astype(jnp.float32)
    if n_pad != n:
        x = jnp.concatenate([x, jnp.zeros((n_pad - n, h, w), jnp.float32)], axis=0)
    # (n_pad, h, w) -> (G, p, h, w) -> (G, h, p, w) -> (G, h, p*w)
    xp = x.reshape(gsteps, p, h, w).transpose(0, 2, 1, 3).reshape(gsteps, h, pw)

    # Explicit scoped-VMEM budget: double-buffered in/out tiles + the two
    # (possibly double-buffered) conv matrices + in-kernel temporaries,
    # with 2x headroom, floored at 16 MiB and capped below v7x's 64 MiB.
    tile_b = h * pw * 4
    mats_b = (h * h + pw * pw) * 2
    footprint = 4 * tile_b + 2 * mats_b + 8 * tile_b
    vmem_limit = int(min(max(2 * footprint, 16 * 2**20), 60 * 2**20))

    kernel = functools.partial(
        _usm_kernel, weight=float(weight), threshold=float(threshold))

    out = pl.pallas_call(
        kernel,
        out_shape=jax.ShapeDtypeStruct((gsteps, h, pw), jnp.float32),
        grid_spec=pltpu.PrefetchScalarGridSpec(
            num_scalar_prefetch=0,
            grid=(gsteps,),
            in_specs=[
                # Constant block index -> DMA'd once, reused every grid step.
                # TODO(synk): for large planes on v7x, single-buffer these
                # (pipeline_mode=pl.Buffered(1)), row-tile x with a halo and
                # skip A_h blocks outside the |i-i'| <= radius//2 band to stay
                # under the 64 MiB VMEM and cut structural-zero MACs.
                pl.BlockSpec((h, h), lambda i: (0, 0)),
                pl.BlockSpec((pw, pw), lambda i: (0, 0)),
                pl.BlockSpec((1, h, pw), lambda i: (i, 0, 0)),
            ],
            out_specs=pl.BlockSpec((1, h, pw), lambda i: (i, 0, 0)),
        ),
        compiler_params=pltpu.CompilerParams(
            dimension_semantics=("parallel",),
            vmem_limit_bytes=vmem_limit,
        ),
    )(ah_bf, bw_bf, xp)

    # Unpack lanes back to planes and crop the plane-count padding.
    out = out.reshape(gsteps, h, p, w).transpose(0, 2, 1, 3).reshape(n_pad, h, w)
    return out[:n].reshape(b, c, h, w)


if __name__ == "__main__":
    key = jax.random.PRNGKey(0)
    b, c, h, w = 2, 4, 16, 16
    img = jax.random.uniform(key, (b, c, h, w), dtype=jnp.float32)  # [0, 1) images

    out = usm_sharp(img, radius=50, sigma=0.0, weight=0.5, threshold=10.0)
    out = jax.block_until_ready(out)

    assert out.shape == (b, c, h, w)
    assert out.dtype == jnp.float32
    assert bool(jnp.all(jnp.isfinite(out)))
    print("KERNEL_OK")
</pallas_src>

<mosaic_0001>
module attributes {stable_mosaic.version = 11 : i64} {
  func.func @_usm_kernel(%arg0: i32, %arg1: memref<16x16xbf16, #tpu.memory_space<vmem>>, %arg2: memref<128x128xbf16, #tpu.memory_space<vmem>>, %arg3: memref<1x16x128xf32, #tpu.memory_space<vmem>>, %arg4: memref<1x16x128xf32, #tpu.memory_space<vmem>>) attributes {dimension_semantics = [#tpu.dimension_semantics<parallel>], iteration_bounds = array<i64: 1>, scalar_prefetch = 0 : i64, scratch_operands = 0 : i64, tpu.core_type = #tpu.core_type<tc>, window_params = [{pipeline_mode = #tpu.pipeline_mode<synchronous>, transform_indices = @transform_0, window_bounds = array<i64: 16, 16>}, {pipeline_mode = #tpu.pipeline_mode<synchronous>, transform_indices = @transform_1, window_bounds = array<i64: 128, 128>}, {transform_indices = @transform_2, window_bounds = array<i64: 1, 16, 128>}, {transform_indices = @transform_3, window_bounds = array<i64: 1, 16, 128>}]} {
    %c0 = arith.constant 0 : index
    %c0_0 = arith.constant 0 : index
    %c0_1 = arith.constant 0 : index
    %0 = vector.load %arg3[%c0, %c0_0, %c0_1] : memref<1x16x128xf32, #tpu.memory_space<vmem>>, vector<1x16x128xf32>
    %1 = vector.shape_cast %0 : vector<1x16x128xf32> to vector<16x128xf32>
    %c0_2 = arith.constant 0 : index
    %c0_3 = arith.constant 0 : index
    %2 = vector.load %arg1[%c0_2, %c0_3] : memref<16x16xbf16, #tpu.memory_space<vmem>>, vector<16x16xbf16>
    %c0_4 = arith.constant 0 : index
    %c0_5 = arith.constant 0 : index
    %3 = vector.load %arg2[%c0_4, %c0_5] : memref<128x128xbf16, #tpu.memory_space<vmem>>, vector<128x128xbf16>
    %4 = arith.truncf %1 : vector<16x128xf32> to vector<16x128xbf16>
    %cst = arith.constant dense<0.000000e+00> : vector<16x128xf32>
    %5 = tpu.matmul %2, %4, %cst {dimension_numbers = #tpu.dot_dimension_numbers<[1], [0], [0], [1], [0, 0, 1, 1], [], []>} : vector<16x16xbf16>, vector<16x128xbf16>, vector<16x128xf32> -> vector<16x128xf32>
    %6 = arith.truncf %5 : vector<16x128xf32> to vector<16x128xbf16>
    %cst_6 = arith.constant dense<0.000000e+00> : vector<16x128xf32>
    %7 = tpu.matmul %6, %3, %cst_6 {dimension_numbers = #tpu.dot_dimension_numbers<[1], [0], [0], [1], [0, 0, 1, 1], [], []>} : vector<16x128xbf16>, vector<128x128xbf16>, vector<16x128xf32> -> vector<16x128xf32>
    %8 = arith.subf %1, %7 : vector<16x128xf32>
    %cst_7 = arith.constant 5.000000e-01 : f32
    %9 = vector.broadcast %cst_7 : f32 to vector<16x128xf32>
    %10 = arith.mulf %9, %8 : vector<16x128xf32>
    %11 = arith.addf %1, %10 : vector<16x128xf32>
    %cst_8 = arith.constant 0.000000e+00 : f32
    %cst_9 = arith.constant 1.000000e+00 : f32
    %12 = vector.broadcast %cst_8 : f32 to vector<16x128xf32>
    %13 = arith.maximumf %12, %11 : vector<16x128xf32>
    %14 = vector.broadcast %cst_9 : f32 to vector<16x128xf32>
    %15 = arith.minimumf %14, %13 : vector<16x128xf32>
    %16 = math.absf %8 : vector<16x128xf32>
    %cst_10 = arith.constant 2.550000e+02 : f32
    %17 = vector.broadcast %cst_10 : f32 to vector<16x128xf32>
    %18 = arith.mulf %16, %17 : vector<16x128xf32>
    %cst_11 = arith.constant 1.000000e+01 : f32
    %19 = vector.broadcast %cst_11 : f32 to vector<16x128xf32>
    %20 = arith.cmpf ogt, %18, %19 : vector<16x128xf32>
    %cst_12 = arith.constant 1.000000e+00 : f32
    %cst_13 = arith.constant 0.000000e+00 : f32
    %21 = vector.broadcast %cst_12 : f32 to vector<16x128xf32>
    %22 = vector.broadcast %cst_13 : f32 to vector<16x128xf32>
    %23 = arith.select %20, %21, %22 : vector<16x128xi1>, vector<16x128xf32>
    %24 = arith.truncf %23 : vector<16x128xf32> to vector<16x128xbf16>
    %cst_14 = arith.constant dense<0.000000e+00> : vector<16x128xf32>
    %25 = tpu.matmul %2, %24, %cst_14 {dimension_numbers = #tpu.dot_dimension_numbers<[1], [0], [0], [1], [0, 0, 1, 1], [], []>} : vector<16x16xbf16>, vector<16x128xbf16>, vector<16x128xf32> -> vector<16x128xf32>
    %26 = arith.truncf %25 : vector<16x128xf32> to vector<16x128xbf16>
    %cst_15 = arith.constant dense<0.000000e+00> : vector<16x128xf32>
    %27 = tpu.matmul %26, %3, %cst_15 {dimension_numbers = #tpu.dot_dimension_numbers<[1], [0], [0], [1], [0, 0, 1, 1], [], []>} : vector<16x128xbf16>, vector<128x128xbf16>, vector<16x128xf32> -> vector<16x128xf32>
    %28 = arith.subf %15, %1 : vector<16x128xf32>
    %29 = arith.mulf %27, %28 : vector<16x128xf32>
    %30 = arith.addf %1, %29 : vector<16x128xf32>
    %c0_16 = arith.constant 0 : index
    %c0_17 = arith.constant 0 : index
    %c0_18 = arith.constant 0 : index
    %31 = vector.load %arg4[%c0_16, %c0_17, %c0_18] : memref<1x16x128xf32, #tpu.memory_space<vmem>>, vector<1x16x128xf32>
    %32 = vector.shape_cast %31 : vector<1x16x128xf32> to vector<16x128xf32>
    %33 = vector.shape_cast %30 : vector<16x128xf32> to vector<1x16x128xf32>
    tpu.vector_store %arg4[%c0_16, %c0_17, %c0_18], %33 {strides = array<i32>} : memref<1x16x128xf32, #tpu.memory_space<vmem>>, vector<1x16x128xf32>,
    return
  }
  func.func @transform_0(%arg0: i32) -> (i32, i32) {
    %c0_i32 = arith.constant 0 : i32
    %c0_i32_0 = arith.constant 0 : i32
    %c0_i32_1 = arith.constant 0 : i32
    return %c0_i32, %c0_i32_0 : i32, i32
  }
  func.func @transform_1(%arg0: i32) -> (i32, i32) {
    %c0_i32 = arith.constant 0 : i32
    %c0_i32_0 = arith.constant 0 : i32
    %c0_i32_1 = arith.constant 0 : i32
    return %c0_i32, %c0_i32_0 : i32, i32
  }
  func.func @transform_2(%arg0: i32) -> (i32, i32, i32) {
    %c0_i32 = arith.constant 0 : i32
    %c0_i32_0 = arith.constant 0 : i32
    %c0_i32_1 = arith.constant 0 : i32
    return %arg0, %c0_i32, %c0_i32_0 : i32, i32, i32
  }
  func.func @transform_3(%arg0: i32) -> (i32, i32, i32) {
    %c0_i32 = arith.constant 0 : i32
    %c0_i32_0 = arith.constant 0 : i32
    %c0_i32_1 = arith.constant 0 : i32
    return %arg0, %c0_i32, %c0_i32_0 : i32, i32, i32
  }
}

</mosaic_0001>

<llo_original>
// kernel: tpu_custom_call.1
$region0: #{tpu_custom_call.1}
  #allocation0 [shape = 'u32[]', space=smem, size = 0x4, offset = 0x4, fixed_abs, tag = 'smem constant byte address 0x4 - core index']
  #allocation1 [shape = 'u32[144,128]{1,0:T(1,128)}', space=vmem, size = 0x12000, scoped, tag = 'internal scratch']
  %s0 = inlined_call_operand.hbm [shape: bf16[16,16], index: 0, kind: input, shape index: {}]
  %s1 = inlined_call_operand.hbm [shape: bf16[128,128], index: 1, kind: input, shape index: {}]
  %s2 = inlined_call_operand.hbm [shape: f32[1,16,128], index: 2, kind: input, shape index: {}]
  %s3 = inlined_call_operand.hbm [shape: f32[1,16,128], index: 3, kind: output, shape index: {}]
  %s4 = sld [smem:[#allocation0]]
  $region34: #{tpu_custom_call.1} parent=0
    _
  %s6 = ssub.s32 1, %s4
  %s7 = scalar_select 0, %s6, %s4
  $region1: #{tpu_custom_call.1} parent=0
    #allocation2 [shape = 'u8[4096]{0}', space=vmem, size = 0x1000, scoped, tag = 'input window, operand 0, single buffered']
    #allocation3 [shape = 's32[1]{0}', space=sflag, size = 0x4, scoped, tag = 'scoped memory for tpu_custom_call.1']
    #allocation4 [shape = 's32[1]{0}', space=sflag, size = 0x4, scoped, tag = 'scoped memory for tpu_custom_call.1']
    #allocation5 [shape = 'u8[32768]{0}', space=vmem, size = 0x8000, scoped, tag = 'input window, operand 1, single buffered']
    #allocation6 [shape = 's32[1]{0}', space=sflag, size = 0x4, scoped, tag = 'scoped memory for tpu_custom_call.1']
    #allocation7 [shape = 'u8[8192]{0}', space=vmem, size = 0x2000, scoped, tag = 'input window, operand 2, single buffered']
    #allocation8 [shape = 'u8[8192]{0}', space=vmem, size = 0x2000, scoped, tag = 'output window, operand 0, single buffered']
    %8 = vsyncpa [#allocation3], 0
    %9 = vsyncpa [#allocation6], 0
    %10 = vsyncpa [#allocation4], 0
    // Predicated region
    $region2: #{tpu_custom_call.1} parent=1 // pred_check
      _
    $region3: #{tpu_custom_call.1} parent=1 // pred_check_branch
      %12 = sbr.rel (0) target = $region5
    $region4: #{tpu_custom_call.1} parent=1 // pred_region
      %s14 = ssub.s32 128, 128
      %15 = vsyncadd [#allocation3], %s14
      %s16 = sshll.u32 [#allocation2], 4
      %s17 = int_to_ptr.vmem [resolvable:$true] %s16
      %22 = dma.hbm_to_vmem [thread:$0]  %s0, 128, %s17, [#allocation3], 64, 64, 4
    $region5: #{tpu_custom_call.1} parent=1 // pred_fallthru
      _
    // Predicated region
    $region6: #{tpu_custom_call.1} parent=1 // pred_check
      _
    $region7: #{tpu_custom_call.1} parent=1 // pred_check_branch
      %24 = sbr.rel (0) target = $region9
    $region8: #{tpu_custom_call.1} parent=1 // pred_region
      %s26 = ssub.s32 1024, 1024
      %27 = vsyncadd [#allocation6], %s26
      %s28 = sshll.u32 [#allocation5], 4
      %s29 = int_to_ptr.vmem [resolvable:$true] %s28
      %34 = dma.hbm_to_vmem [thread:$0]  %s1, 1024, %s29, [#allocation6], 64, 64, 4
    $region9: #{tpu_custom_call.1} parent=1 // pred_fallthru
      _
    // Predicated region
    $region10: #{tpu_custom_call.1} parent=1 // pred_check
      _
    $region11: #{tpu_custom_call.1} parent=1 // pred_check_branch
      %36 = sbr.rel (0) target = $region13
    $region12: #{tpu_custom_call.1} parent=1 // pred_region
      %s38 = ssub.s32 256, 256
      %39 = vsyncadd [#allocation6], %s38
      %s40 = sshll.u32 [#allocation7], 4
      %s41 = int_to_ptr.vmem [resolvable:$true] %s40
      %46 = dma.hbm_to_vmem [thread:$0]  %s2, 256, %s41, [#allocation6], 128, 128, 8
    $region13: #{tpu_custom_call.1} parent=1 // pred_fallthru
      _
    // Predicated region
    $region14: #{tpu_custom_call.1} parent=1 // pred_check
      _
    $region15: #{tpu_custom_call.1} parent=1 // pred_check_branch
      %48 = sbr.rel (0) target = $region17
    $region16: #{tpu_custom_call.1} parent=1 // pred_region
      %49 = dma.done [#allocation3], 128
    $region17: #{tpu_custom_call.1} parent=1 // pred_fallthru
      _
    // Predicated region
    $region18: #{tpu_custom_call.1} parent=1 // pred_check
      _
    $region19: #{tpu_custom_call.1} parent=1 // pred_check_branch
      %51 = sbr.rel (0) target = $region21
    $region20: #{tpu_custom_call.1} parent=1 // pred_region
      %52 = dma.done [#allocation6], 1024
    $region21: #{tpu_custom_call.1} parent=1 // pred_fallthru
      _
    // Predicated region
    $region22: #{tpu_custom_call.1} parent=1 // pred_check
      _
    $region23: #{tpu_custom_call.1} parent=1 // pred_check_branch
      %54 = sbr.rel (0) target = $region25
    $region24: #{tpu_custom_call.1} parent=1 // pred_region
      %55 = dma.done [#allocation6], 256
    $region25: #{tpu_custom_call.1} parent=1 // pred_fallthru
      _
    %v57 = vld [vmem:[#allocation7] sm:$0xff]
    %v58 = vld [vmem:[#allocation7 + $0x8] sm:$0xff]
    %v59 = vld [vmem:[#allocation2] sm:$0xf]
    %v60 = vld [vmem:[#allocation2 + $0x4] sm:$0xf]
    %v61 = vld [vmem:[#allocation5] sm:$0xf]
    %v62 = vld [vmem:[#allocation5 + $0x4] sm:$0xf]
    %v63 = vld [vmem:[#allocation5 + $0x8] sm:$0xf]
    %v64 = vld [vmem:[#allocation5 + $0xc] sm:$0xf]
    %v65 = vld [vmem:[#allocation5 + $0x10] sm:$0xf]
    %v66 = vld [vmem:[#allocation5 + $0x14] sm:$0xf]
    %v67 = vld [vmem:[#allocation5 + $0x18] sm:$0xf]
    %v68 = vld [vmem:[#allocation5 + $0x1c] sm:$0xf]
    %v69 = vld [vmem:[#allocation5 + $0x20] sm:$0xf]
    %v70 = vld [vmem:[#allocation5 + $0x24] sm:$0xf]
    %v71 = vld [vmem:[#allocation5 + $0x28] sm:$0xf]
    %v72 = vld [vmem:[#allocation5 + $0x2c] sm:$0xf]
    %v73 = vld [vmem:[#allocation5 + $0x30] sm:$0xf]
    %v74 = vld [vmem:[#allocation5 + $0x34] sm:$0xf]
    %v75 = vld [vmem:[#allocation5 + $0x38] sm:$0xf]
    %v76 = vld [vmem:[#allocation5 + $0x3c] sm:$0xf]
    %v77 = vpack.c.bf16 %v58, %v57
    %v80 = vunpack.c.l.b16 %v59
    %v81 = vunpack.c.l.b16 %v60
    %v82 = vpack.c.b16 %v81, %v80
    %vm83 = vcmask 130048
    %v85 = vsel %vm83, %v82, 0
    %87 = vmatprep.subr.bf16.mxu0 0
    %88 = vmatpush1.bf16.msra.mxu0 0
    %89 = vmatprep.subr.bf16.mxu0 0
    %90 = vmatpush1.bf16.msra.mxu0 0
    %91 = vmatprep.subr.bf16.mxu0 0
    %92 = vmatpush1.bf16.msra.mxu0 0
    %93 = vmatprep.subr.bf16.mxu0 0
    %94 = vmatpush1.bf16.msra.mxu0 0
    %95 = vmatprep.subr.bf16.mxu0 0
    %96 = vmatpush1.bf16.msra.mxu0 0
    %97 = vmatprep.subr.bf16.mxu0 0
    %98 = vmatpush1.bf16.msra.mxu0 0
    %99 = vmatprep.subr.bf16.mxu0 0
    %100 = vmatpush1.bf16.msra.mxu0 0
    %101 = vmatprep.subr.bf16.mxu0 0
    %102 = vmatpush1.bf16.msra.mxu0 %v77
    %103 = vmatprep.subr.bf16.mxu0 0
    %104 = vmatpush2.bf16.msra.mxu0 0
    %105 = vmatprep.subr.bf16.mxu0 0
    %106 = vmatpush2.bf16.msra.mxu0 0
    %107 = vmatprep.subr.bf16.mxu0 0
    %108 = vmatpush2.bf16.msra.mxu0 0
    %109 = vmatprep.subr.bf16.mxu0 0
    %110 = vmatpush2.bf16.msra.mxu0 0
    %111 = vmatprep.subr.bf16.mxu0 0
    %112 = vmatpush2.bf16.msra.mxu0 0
    %113 = vmatprep.subr.bf16.mxu0 0
    %114 = vmatpush2.bf16.msra.mxu0 0
    %115 = vmatprep.subr.bf16.mxu0 0
    %116 = vmatpush2.bf16.msra.mxu0 0
    %117 = vmatprep.subr.bf16.mxu0 0
    %118 = vmatpush2.bf16.msra.mxu0 0
    %119 = vmatprep.mubr.bf16.mxu0 0
    %120 = vmatmul.mubr.bf16.gmra.mxu0 %v85
    %v121 = vpop.f32.mrf.mxu0
    %v122 = vadd.f32 0.0, %v121
    %v123 = vpop.f32.mrf.mxu0
    %v124 = vpop.f32.mrf.mxu0
    %v125 = vadd.f32 0.0, %v124
    %v126 = vpop.f32.mrf.mxu0
    %127 = vdwg.mxu0
    %v128 = vpack.c.bf16 %v125, %v122
    %v145 = vunpack.c.l.b16 %v61
    %v146 = vunpack.c.l.b16 %v62
    %v147 = vunpack.c.l.b16 %v63
    %v148 = vunpack.c.l.b16 %v64
    %v149 = vunpack.c.l.b16 %v65
    %v150 = vunpack.c.l.b16 %v66
    %v151 = vunpack.c.l.b16 %v67
    %v152 = vunpack.c.l.b16 %v68
    %v153 = vunpack.c.l.b16 %v69
    %v154 = vunpack.c.l.b16 %v70
    %v155 = vunpack.c.l.b16 %v71
    %v156 = vunpack.c.l.b16 %v72
    %v157 = vunpack.c.l.b16 %v73
    %v158 = vunpack.c.l.b16 %v74
    %v159 = vunpack.c.l.b16 %v75
    %v160 = vunpack.c.l.b16 %v76
    %v161 = vpack.c.b16 %v146, %v145
    %v162 = vpack.c.b16 %v148, %v147
    %v163 = vpack.c.b16 %v150, %v149
    %v164 = vpack.c.b16 %v152, %v151
    %v165 = vpack.c.b16 %v154, %v153
    %v166 = vpack.c.b16 %v156, %v155
    %v167 = vpack.c.b16 %v158, %v157
    %v168 = vpack.c.b16 %v160, %v159
    %177 = vmatprep.subr.bf16.mxu0 0
    %178 = vmatpush1.bf16.msra.mxu0 %v168
    %179 = vmatprep.subr.bf16.mxu0 0
    %180 = vmatpush1.bf16.msra.mxu0 %v167
    %181 = vmatprep.subr.bf16.mxu0 0
    %182 = vmatpush1.bf16.msra.mxu0 %v166
    %183 = vmatprep.subr.bf16.mxu0 0
    %184 = vmatpush1.bf16.msra.mxu0 %v165
    %185 = vmatprep.subr.bf16.mxu0 0
    %186 = vmatpush1.bf16.msra.mxu0 %v164
    %187 = vmatprep.subr.bf16.mxu0 0
    %188 = vmatpush1.bf16.msra.mxu0 %v163
    %189 = vmatprep.subr.bf16.mxu0 0
    %190 = vmatpush1.bf16.msra.mxu0 %v162
    %191 = vmatprep.subr.bf16.mxu0 0
    %192 = vmatpush1.bf16.msra.mxu0 %v161
    %193 = vmatprep.subr.bf16.mxu0 0
    %194 = vmatpush2.bf16.msra.mxu0 0
    %195 = vmatprep.subr.bf16.mxu0 0
    %196 = vmatpush2.bf16.msra.mxu0 0
    %197 = vmatprep.subr.bf16.mxu0 0
    %198 = vmatpush2.bf16.msra.mxu0 0
    %199 = vmatprep.subr.bf16.mxu0 0
    %200 = vmatpush2.bf16.msra.mxu0 0
    %201 = vmatprep.subr.bf16.mxu0 0
    %202 = vmatpush2.bf16.msra.mxu0 0
    %203 = vmatprep.subr.bf16.mxu0 0
    %204 = vmatpush2.bf16.msra.mxu0 0
    %205 = vmatprep.subr.bf16.mxu0 0
    %206 = vmatpush2.bf16.msra.mxu0 0
    %207 = vmatprep.subr.bf16.mxu0 0
    %208 = vmatpush2.bf16.msra.mxu0 0
    %209 = vmatprep.mubr.bf16.mxu0 0
    %210 = vmatmul.mubr.bf16.gmra.mxu0 %v128
    %v211 = vpop.f32.mrf.mxu0
    %v212 = vadd.f32 0.0, %v211
    %v213 = vpop.f32.mrf.mxu0
    %v214 = vpop.f32.mrf.mxu0
    %v215 = vadd.f32 0.0, %v214
    %v216 = vpop.f32.mrf.mxu0
    %217 = vdwg.mxu0
    %v218 = vsub.f32 %v57, %v212
    %v219 = vsub.f32 %v58, %v215
    %v220 = vmul.f32 %v218, 0.5
    %v221 = vmul.f32 %v219, 0.5
    %v222 = vadd.f32 %v57, %v220
    %v223 = vadd.f32 %v58, %v221
    %v224 = vmax.f32 %v222, 0.0
    %v225 = vmax.f32 %v223, 0.0
    %v226 = vmin.f32 %v224, 1.0
    %v227 = vmin.f32 %v225, 1.0
    %v228 = vand.u32 2147483647, %v218
    %v229 = vand.u32 2147483647, %v219
    %v230 = vmul.f32 %v228, 255.0
    %v231 = vmul.f32 %v229, 255.0
    %vm232 = vcmp.gt.f32.partialorder %v230, 10.0
    %vm233 = vcmp.gt.f32.partialorder %v231, 10.0
    %v234 = vsel %vm232, 1.0, 0.0
    %v235 = vsel %vm233, 1.0, 0.0
    %v236 = vpack.c.bf16 %v235, %v234
    %237 = vmatprep.subr.bf16.mxu0 0
    %238 = vmatpush1.bf16.msra.mxu0 0
    %239 = vmatprep.subr.bf16.mxu0 0
    %240 = vmatpush1.bf16.msra.mxu0 0
    %241 = vmatprep.subr.bf16.mxu0 0
    %242 = vmatpush1.bf16.msra.mxu0 0
    %243 = vmatprep.subr.bf16.mxu0 0
    %244 = vmatpush1.bf16.msra.mxu0 0
    %245 = vmatprep.subr.bf16.mxu0 0
    %246 = vmatpush1.bf16.msra.mxu0 0
    %247 = vmatprep.subr.bf16.mxu0 0
    %248 = vmatpush1.bf16.msra.mxu0 0
    %249 = vmatprep.subr.bf16.mxu0 0
    %250 = vmatpush1.bf16.msra.mxu0 0
    %251 = vmatprep.subr.bf16.mxu0 0
    %252 = vmatpush1.bf16.msra.mxu0 %v236
    %253 = vmatprep.subr.bf16.mxu0 0
    %254 = vmatpush2.bf16.msra.mxu0 0
    %255 = vmatprep.subr.bf16.mxu0 0
    %256 = vmatpush2.bf16.msra.mxu0 0
    %257 = vmatprep.subr.bf16.mxu0 0
    %258 = vmatpush2.bf16.msra.mxu0 0
    %259 = vmatprep.subr.bf16.mxu0 0
    %260 = vmatpush2.bf16.msra.mxu0 0
    %261 = vmatprep.subr.bf16.mxu0 0
    %262 = vmatpush2.bf16.msra.mxu0 0
    %263 = vmatprep.subr.bf16.mxu0 0
    %264 = vmatpush2.bf16.msra.mxu0 0
    %265 = vmatprep.subr.bf16.mxu0 0
    %266 = vmatpush2.bf16.msra.mxu0 0
    %267 = vmatprep.subr.bf16.mxu0 0
    %268 = vmatpush2.bf16.msra.mxu0 0
    %269 = vmatprep.mubr.bf16.mxu0 0
    %270 = vmatmul.mubr.bf16.gmra.mxu0 %v85
    %v271 = vpop.f32.mrf.mxu0
    %v272 = vadd.f32 0.0, %v271
    %v273 = vpop.f32.mrf.mxu0
    %v274 = vpop.f32.mrf.mxu0
    %v275 = vadd.f32 0.0, %v274
    %v276 = vpop.f32.mrf.mxu0
    %277 = vdwg.mxu0
    %v278 = vpack.c.bf16 %v275, %v272
    %279 = vmatprep.subr.bf16.mxu0 0
    %280 = vmatpush1.bf16.msra.mxu0 %v168
    %281 = vmatprep.subr.bf16.mxu0 0
    %282 = vmatpush1.bf16.msra.mxu0 %v167
    %283 = vmatprep.subr.bf16.mxu0 0
    %284 = vmatpush1.bf16.msra.mxu0 %v166
    %285 = vmatprep.subr.bf16.mxu0 0
    %286 = vmatpush1.bf16.msra.mxu0 %v165
    %287 = vmatprep.subr.bf16.mxu0 0
    %288 = vmatpush1.bf16.msra.mxu0 %v164
    %289 = vmatprep.subr.bf16.mxu0 0
    %290 = vmatpush1.bf16.msra.mxu0 %v163
    %291 = vmatprep.subr.bf16.mxu0 0
    %292 = vmatpush1.bf16.msra.mxu0 %v162
    %293 = vmatprep.subr.bf16.mxu0 0
    %294 = vmatpush1.bf16.msra.mxu0 %v161
    %295 = vmatprep.subr.bf16.mxu0 0
    %296 = vmatpush2.bf16.msra.mxu0 0
    %297 = vmatprep.subr.bf16.mxu0 0
    %298 = vmatpush2.bf16.msra.mxu0 0
    %299 = vmatprep.subr.bf16.mxu0 0
    %300 = vmatpush2.bf16.msra.mxu0 0
    %301 = vmatprep.subr.bf16.mxu0 0
    %302 = vmatpush2.bf16.msra.mxu0 0
    %303 = vmatprep.subr.bf16.mxu0 0
    %304 = vmatpush2.bf16.msra.mxu0 0
    %305 = vmatprep.subr.bf16.mxu0 0
    %306 = vmatpush2.bf16.msra.mxu0 0
    %307 = vmatprep.subr.bf16.mxu0 0
    %308 = vmatpush2.bf16.msra.mxu0 0
    %309 = vmatprep.subr.bf16.mxu0 0
    %310 = vmatpush2.bf16.msra.mxu0 0
    %311 = vmatprep.mubr.bf16.mxu0 0
    %312 = vmatmul.mubr.bf16.gmra.mxu0 %v278
    %v313 = vpop.f32.mrf.mxu0
    %v314 = vadd.f32 0.0, %v313
    %v315 = vpop.f32.mrf.mxu0
    %v316 = vpop.f32.mrf.mxu0
    %v317 = vadd.f32 0.0, %v316
    %v318 = vpop.f32.mrf.mxu0
    %319 = vdwg.mxu0
    %v320 = vsub.f32 %v226, %v57
    %v321 = vsub.f32 %v227, %v58
    %v322 = vmul.f32 %v314, %v320
    %v323 = vmul.f32 %v317, %v321
    %v324 = vadd.f32 %v57, %v322
    %v325 = vadd.f32 %v58, %v323
    %326 = vst [vmem:[#allocation8] sm:$0xff] %v324
    %327 = vst [vmem:[#allocation8 + $0x8] sm:$0xff] %v325
    // Predicated region
    $region26: #{tpu_custom_call.1} parent=1 // pred_check
      _
    $region27: #{tpu_custom_call.1} parent=1 // pred_check_branch
      %329 = sbr.rel (0) target = $region29
    $region28: #{tpu_custom_call.1} parent=1 // pred_region
      %s331 = ssub.s32 256, 256
      %332 = vsyncadd [#allocation4], %s331
      %s333 = sshll.u32 [#allocation8], 4
      %s334 = int_to_ptr.vmem [resolvable:$true] %s333
      %339 = dma.vmem_to_hbm [thread:$0]  %s334, 256, %s3, [#allocation4], 128, 128, 8
    $region29: #{tpu_custom_call.1} parent=1 // pred_fallthru
      _
    // Predicated region
    $region30: #{tpu_custom_call.1} parent=1 // pred_check
      _
    $region31: #{tpu_custom_call.1} parent=1 // pred_check_branch
      %341 = sbr.rel (0) target = $region33
    $region32: #{tpu_custom_call.1} parent=1 // pred_region
      %342 = dma.done [#allocation4], 256
    $region33: #{tpu_custom_call.1} parent=1 // pred_fallthru
      _
    %343 = vsyncpa [#allocation3], 1
    %344 = vsyncpa [#allocation6], 1
    %345 = vsyncpa [#allocation4], 1

</llo_original>
